<compile_context>
chip_gen: v7x
topology: tpu7x:2x2x1
jax: 0.10.0
libtpu: 0.0.40
codegen_flags: <defaults>
</compile_context>

<pallas_src>
import functools

import jax
import jax.numpy as jnp
from jax.experimental import pallas as pl
from jax.experimental.pallas import tpu as pltpu


def _largest_aligned_divisor(dim, tk):
    """Largest multiple of 128 that divides `dim` and is <= tk (or None)."""
    cand = min(tk, dim)
    cand = (cand // 128) * 128
    for b in range(cand, 0, -128):
        if dim % b == 0:
            return b
    return None


def _dc_fused_kernel(x_ref, w1_ref, b1_ref, w2_ref, b2_ref, o_ref, acc_ref):
    """Grid = (K_steps,).  Streams W1/x K-tiles; fused epilogue on last step."""
    k = pl.program_id(0)

    @pl.when(k == 0)
    def _():
        acc_ref[...] = jnp.zeros_like(acc_ref)

    # Contract the lane-dense K tiles of x (B, tk) and W1 (H, tk) directly over
    # their last axes -> (B, H).  No `.T` on the streamed block; bf16/f32 inputs
    # accumulate in f32 on the MXU via preferred_element_type.
    acc_ref[...] += jax.lax.dot_general(
        x_ref[...], w1_ref[...],
        dimension_numbers=(((1,), (1,)), ((), ())),
        preferred_element_type=jnp.float32)

    @pl.when(k == pl.num_programs(0) - 1)
    def _():
        # Fused epilogue: bias + ReLU + tiny second linear + bias + log-softmax.
        h = jnp.maximum(acc_ref[...] + b1_ref[...].astype(jnp.float32), 0.0)   # (B, H)
        logits = jax.lax.dot_general(
            h, w2_ref[...].astype(jnp.float32),
            dimension_numbers=(((1,), (1,)), ((), ())),
            preferred_element_type=jnp.float32)
        logits = logits + b2_ref[...].astype(jnp.float32)                      # (B, C)
        m = jnp.max(logits, axis=-1, keepdims=True)
        z = logits - m
        lse = jnp.log(jnp.sum(jnp.exp(z), axis=-1, keepdims=True))
        o_ref[...] = (z - lse).astype(o_ref.dtype)


def _dc_partial_kernel(x_ref, w1_ref, part_ref):
    """Grid = (S, K_steps).  Each parallel split s accumulates its own (B, H)
    partial of x @ W1^T directly into its resident output block."""
    j = pl.program_id(1)

    @pl.when(j == 0)
    def _():
        part_ref[...] = jnp.zeros_like(part_ref)

    partial = jax.lax.dot_general(
        x_ref[...], w1_ref[...],
        dimension_numbers=(((1,), (1,)), ((), ())),
        preferred_element_type=jnp.float32)           # (B, H)
    part_ref[...] += partial[None, :, :]              # part block is (1, B, H)


@functools.partial(jax.jit, static_argnames=("tk", "stream_dtype", "num_k_splits"))
def domain_classifier_forward(x, w1, b1, w2, b2, *, tk=8192,
                              stream_dtype=None, num_k_splits=1):
    """DomainClassifier forward: log_softmax(relu(x @ W1^T + b1) @ W2^T + b2).

    x  : (B, D_in)            flattened input (module uses D_in = 4*512*512)
    w1 : (H, D_in), b1: (H,)  first Linear (PyTorch layout, NOT pre-transposed)
    w2 : (C, H),    b2: (C,)  second Linear
    tk           : reduction-axis tile; 8192-16384 keeps steps DMA-bound while
                   staying well inside VMEM even on v7x (64 MiB).
    stream_dtype : e.g. jnp.bfloat16 to halve the dominant W1/x HBM stream
                   (f32 accumulation is kept in-kernel).
    num_k_splits : 2 splits the K stream across both v7x TensorCores
                   ("parallel" leading grid axis); leave at 1 on v5e/v6e.
    returns      : (B, C) log-probabilities in the original x dtype.
    """
    # TODO(synk): GradientReversal only flips/scales gradients in backward; its
    # forward is the identity, so it has no kernel counterpart here (a training
    # path would wrap this op in a custom_vjp that negates dx by alpha).
    out_dtype = x.dtype
    B, D_in = x.shape
    H, d_in_w = w1.shape
    C, h_w = w2.shape
    assert d_in_w == D_in and h_w == H

    if stream_dtype is not None:
        x = x.astype(stream_dtype)
        w1 = w1.astype(stream_dtype)
    itemsize = jnp.dtype(x.dtype).itemsize

    def _compiler_params(dims, block_k):
        # Raise the scoped-VMEM limit only when the double-buffered W1/x blocks
        # would brush the default limit (large tk / f32); capped for v7x.
        est = 2 * (H + B) * block_k * itemsize + 8 * B * H * 4 + (1 << 20)
        vmem_limit = min(est + (4 << 20), 48 << 20) if est > (12 << 20) else None
        return pltpu.CompilerParams(dimension_semantics=dims,
                                    vmem_limit_bytes=vmem_limit)

    if num_k_splits <= 1:
        # ---- Single-core fused streaming path (default). ----
        if D_in <= tk:
            block_k, pad = D_in, 0
        else:
            b = _largest_aligned_divisor(D_in, tk)
            if b is not None:
                block_k, pad = b, 0
            else:
                # Ragged fallback (never hit for D_in = 2^20): zero-pad K, which
                # does not change the accumulated dot product.
                block_k = tk
                pad = (-D_in) % tk
        if pad:
            x = jnp.pad(x, ((0, 0), (0, pad)))
            w1 = jnp.pad(w1, ((0, 0), (0, pad)))
        k_steps = (D_in + pad) // block_k

        return pl.pallas_call(
            _dc_fused_kernel,
            out_shape=jax.ShapeDtypeStruct((B, C), out_dtype),
            grid=(k_steps,),
            in_specs=[
                pl.BlockSpec((B, block_k), lambda k: (0, k)),   # x  : lane-dense K tiles
                pl.BlockSpec((H, block_k), lambda k: (0, k)),   # W1 : lane-dense K tiles
                pl.BlockSpec((1, H), lambda k: (0, 0)),         # b1 : tiny, resident
                pl.BlockSpec((C, H), lambda k: (0, 0)),         # W2 : tiny, resident
                pl.BlockSpec((1, C), lambda k: (0, 0)),         # b2 : tiny, resident
            ],
            out_specs=pl.BlockSpec((B, C), lambda k: (0, 0)),   # written once at the end
            scratch_shapes=[pltpu.VMEM((B, H), jnp.float32)],   # f32 accumulator
            compiler_params=_compiler_params(("arbitrary",), block_k),
        )(x, w1, b1.reshape(1, H), w2, b2.reshape(1, C))

    # ---- Multi-core path (v7x): split the K stream across TensorCores. ----
    S = num_k_splits
    assert D_in % S == 0, "num_k_splits must divide D_in"
    k_per_split = D_in // S
    block_k = _largest_aligned_divisor(k_per_split, tk)
    assert block_k is not None, "per-split K needs a 128-aligned divisor <= tk"
    k_steps = k_per_split // block_k

    part = pl.pallas_call(
        _dc_partial_kernel,
        out_shape=jax.ShapeDtypeStruct((S, B, H), jnp.float32),
        grid=(S, k_steps),
        in_specs=[
            pl.BlockSpec((B, block_k), lambda s, j: (0, s * k_steps + j)),
            pl.BlockSpec((H, block_k), lambda s, j: (0, s * k_steps + j)),
        ],
        out_specs=pl.BlockSpec((1, B, H), lambda s, j: (s, 0, 0)),
        compiler_params=_compiler_params(("parallel", "arbitrary"), block_k),
    )(x, w1)

    # Tiny combine + epilogue (B*H ~ a few hundred values): plain JAX is fine.
    acc = jnp.sum(part, axis=0)                                   # (B, H) f32
    h = jnp.maximum(acc + b1.astype(jnp.float32)[None, :], 0.0)
    logits = h @ w2.astype(jnp.float32).T + b2.astype(jnp.float32)[None, :]
    return jax.nn.log_softmax(logits, axis=1).astype(out_dtype)


if __name__ == "__main__":
    key = jax.random.PRNGKey(0)
    k_x, k_w1, k_b1, k_w2, k_b2 = jax.random.split(key, 5)

    # Scaled-down DomainClassifier: a (2, 4, 16, 16) input (stands in for the
    # module's 4x512x512 feature map), hidden = 100 (as in the module),
    # out_channels = 4, batch = 2.
    B, C_in, SP, H, C = 2, 4, 16, 100, 4
    D_in = C_in * SP * SP                                   # 1024

    x_img = jax.random.normal(k_x, (B, C_in, SP, SP), dtype=jnp.float32)
    x = x_img.reshape(B, D_in)                              # Linear expects flat features

    bound1 = 1.0 / (D_in ** 0.5)
    w1 = jax.random.uniform(k_w1, (H, D_in), jnp.float32, -bound1, bound1)
    b1 = jax.random.uniform(k_b1, (H,), jnp.float32, -bound1, bound1)
    bound2 = 1.0 / (H ** 0.5)
    w2 = jax.random.uniform(k_w2, (C, H), jnp.float32, -bound2, bound2)
    b2 = jax.random.uniform(k_b2, (C,), jnp.float32, -bound2, bound2)

    # Pure-JAX reference of (GradientReversal ->) Linear -> ReLU -> Linear -> LogSoftmax.
    h_ref = jnp.maximum(x @ w1.T + b1, 0.0)
    ref = jax.nn.log_softmax(h_ref @ w2.T + b2, axis=1)

    # 1) Default fused streaming path (f32); tk=512 here so the small demo
    #    exercises the multi-step accumulation loop.
    out = domain_classifier_forward(x, w1, b1, w2, b2, tk=512)
    jax.block_until_ready(out)
    assert out.shape == (B, C)
    assert jnp.allclose(out, ref, atol=1e-3, rtol=1e-3)

    # 2) Two-way K split (v7x dual-TensorCore path), still f32.
    out_split = domain_classifier_forward(x, w1, b1, w2, b2, tk=512, num_k_splits=2)
    jax.block_until_ready(out_split)
    assert jnp.allclose(out_split, ref, atol=1e-3, rtol=1e-3)

    # 3) bf16 streaming of the bandwidth-dominant x/W1 (f32 accumulation kept).
    out_bf16 = domain_classifier_forward(x, w1, b1, w2, b2, tk=512,
                                         stream_dtype=jnp.bfloat16)
    jax.block_until_ready(out_bf16)
    assert jnp.allclose(out_bf16, ref, atol=3e-2, rtol=3e-2)

    print("KERNEL_OK")
</pallas_src>

<mosaic_0001>
module attributes {stable_mosaic.version = 11 : i64} {
  func.func @_dc_fused_kernel(%arg0: i32, %arg1: memref<2x512xf32, #tpu.memory_space<vmem>>, %arg2: memref<100x512xf32, #tpu.memory_space<vmem>>, %arg3: memref<1x100xf32, #tpu.memory_space<vmem>>, %arg4: memref<4x100xf32, #tpu.memory_space<vmem>>, %arg5: memref<1x4xf32, #tpu.memory_space<vmem>>, %arg6: memref<2x4xf32, #tpu.memory_space<vmem>>, %arg7: memref<2x100xf32, #tpu.memory_space<vmem>>) attributes {dimension_semantics = [#tpu.dimension_semantics<arbitrary>], iteration_bounds = array<i64: 2>, scalar_prefetch = 0 : i64, scratch_operands = 1 : i64, tpu.core_type = #tpu.core_type<tc>, window_params = [{transform_indices = @transform_0, window_bounds = array<i64: 2, 512>}, {transform_indices = @transform_1, window_bounds = array<i64: 100, 512>}, {pipeline_mode = #tpu.pipeline_mode<synchronous>, transform_indices = @transform_2, window_bounds = array<i64: 1, 100>}, {pipeline_mode = #tpu.pipeline_mode<synchronous>, transform_indices = @transform_3, window_bounds = array<i64: 4, 100>}, {pipeline_mode = #tpu.pipeline_mode<synchronous>, transform_indices = @transform_4, window_bounds = array<i64: 1, 4>}, {pipeline_mode = #tpu.pipeline_mode<synchronous>, transform_indices = @transform_5, window_bounds = array<i64: 2, 4>}]} {
    %c0_i32 = arith.constant 0 : i32
    %0 = arith.cmpi eq, %arg0, %c0_i32 : i32
    %1 = arith.extui %0 : i1 to i32
    %c0_i32_0 = arith.constant 0 : i32
    %2 = arith.cmpi ne, %1, %c0_i32_0 : i32
    scf.if %2 {
      %cst_9 = arith.constant 0.000000e+00 : f32
      %12 = vector.broadcast %cst_9 : f32 to vector<2x100xf32>
      %c0_10 = arith.constant 0 : index
      %c0_11 = arith.constant 0 : index
      %13 = vector.load %arg7[%c0_10, %c0_11] : memref<2x100xf32, #tpu.memory_space<vmem>>, vector<2x100xf32>
      tpu.vector_store %arg7[%c0_10, %c0_11], %12 {strides = array<i32>} : memref<2x100xf32, #tpu.memory_space<vmem>>, vector<2x100xf32>,
    } else {
    }
    %c0 = arith.constant 0 : index
    %c0_1 = arith.constant 0 : index
    %3 = vector.load %arg7[%c0, %c0_1] : memref<2x100xf32, #tpu.memory_space<vmem>>, vector<2x100xf32>
    %c0_2 = arith.constant 0 : index
    %c0_3 = arith.constant 0 : index
    %4 = vector.load %arg1[%c0_2, %c0_3] : memref<2x512xf32, #tpu.memory_space<vmem>>, vector<2x512xf32>
    %c0_4 = arith.constant 0 : index
    %c0_5 = arith.constant 0 : index
    %5 = vector.load %arg2[%c0_4, %c0_5] : memref<100x512xf32, #tpu.memory_space<vmem>>, vector<100x512xf32>
    %cst = arith.constant dense<0.000000e+00> : vector<2x100xf32>
    %6 = tpu.matmul %4, %5, %cst {dimension_numbers = #tpu.dot_dimension_numbers<[1], [1], [0], [0], [0, 0, 1, 0], [], []>} : vector<2x512xf32>, vector<100x512xf32>, vector<2x100xf32> -> vector<2x100xf32>
    %7 = arith.addf %3, %6 : vector<2x100xf32>
    %c0_6 = arith.constant 0 : index
    %c0_7 = arith.constant 0 : index
    %8 = vector.load %arg7[%c0_6, %c0_7] : memref<2x100xf32, #tpu.memory_space<vmem>>, vector<2x100xf32>
    tpu.vector_store %arg7[%c0_6, %c0_7], %7 {strides = array<i32>} : memref<2x100xf32, #tpu.memory_space<vmem>>, vector<2x100xf32>,
    %c1_i32 = arith.constant 1 : i32
    %9 = arith.cmpi eq, %arg0, %c1_i32 : i32
    %10 = arith.extui %9 : i1 to i32
    %c0_i32_8 = arith.constant 0 : i32
    %11 = arith.cmpi ne, %10, %c0_i32_8 : i32
    scf.if %11 {
      %c0_9 = arith.constant 0 : index
      %c0_10 = arith.constant 0 : index
      %12 = vector.load %arg7[%c0_9, %c0_10] : memref<2x100xf32, #tpu.memory_space<vmem>>, vector<2x100xf32>
      %c0_11 = arith.constant 0 : index
      %c0_12 = arith.constant 0 : index
      %13 = vector.load %arg3[%c0_11, %c0_12] : memref<1x100xf32, #tpu.memory_space<vmem>>, vector<1x100xf32>
      %14 = vector.broadcast %13 : vector<1x100xf32> to vector<2x100xf32>
      %15 = arith.addf %12, %14 : vector<2x100xf32>
      %cst_13 = arith.constant 0.000000e+00 : f32
      %16 = vector.broadcast %cst_13 : f32 to vector<2x100xf32>
      %17 = arith.maximumf %15, %16 : vector<2x100xf32>
      %c0_14 = arith.constant 0 : index
      %c0_15 = arith.constant 0 : index
      %18 = vector.load %arg4[%c0_14, %c0_15] : memref<4x100xf32, #tpu.memory_space<vmem>>, vector<4x100xf32>
      %cst_16 = arith.constant dense<0.000000e+00> : vector<2x4xf32>
      %19 = tpu.matmul %17, %18, %cst_16 {dimension_numbers = #tpu.dot_dimension_numbers<[1], [1], [0], [0], [0, 0, 1, 0], [], []>} : vector<2x100xf32>, vector<4x100xf32>, vector<2x4xf32> -> vector<2x4xf32>
      %c0_17 = arith.constant 0 : index
      %c0_18 = arith.constant 0 : index
      %20 = vector.load %arg5[%c0_17, %c0_18] : memref<1x4xf32, #tpu.memory_space<vmem>>, vector<1x4xf32>
      %21 = vector.broadcast %20 : vector<1x4xf32> to vector<2x4xf32>
      %22 = arith.addf %19, %21 : vector<2x4xf32>
      %cst_19 = arith.constant dense<0xFF800000> : vector<2xf32>
      %23 = vector.multi_reduction <maximumf>, %22, %cst_19 [1] : vector<2x4xf32> to vector<2xf32>
      %24 = vector.shape_cast %23 : vector<2xf32> to vector<2x1xf32>
      %25 = vector.broadcast %24 : vector<2x1xf32> to vector<2x4xf32>
      %26 = arith.subf %22, %25 : vector<2x4xf32>
      %27 = math.exp %26 : vector<2x4xf32>
      %cst_20 = arith.constant dense<0.000000e+00> : vector<2xf32>
      %28 = vector.multi_reduction <add>, %27, %cst_20 [1] : vector<2x4xf32> to vector<2xf32>
      %29 = vector.shape_cast %28 : vector<2xf32> to vector<2x1xf32>
      %30 = math.log %29 : vector<2x1xf32>
      %31 = vector.broadcast %30 : vector<2x1xf32> to vector<2x4xf32>
      %32 = arith.subf %26, %31 : vector<2x4xf32>
      %c0_21 = arith.constant 0 : index
      %c0_22 = arith.constant 0 : index
      %33 = vector.load %arg6[%c0_21, %c0_22] : memref<2x4xf32, #tpu.memory_space<vmem>>, vector<2x4xf32>
      tpu.vector_store %arg6[%c0_21, %c0_22], %32 {strides = array<i32>} : memref<2x4xf32, #tpu.memory_space<vmem>>, vector<2x4xf32>,
    } else {
    }
    return
  }
  func.func @transform_0(%arg0: i32) -> (i32, i32) {
    %c0_i32 = arith.constant 0 : i32
    %c0_i32_0 = arith.constant 0 : i32
    return %c0_i32, %arg0 : i32, i32
  }
  func.func @transform_1(%arg0: i32) -> (i32, i32) {
    %c0_i32 = arith.constant 0 : i32
    %c0_i32_0 = arith.constant 0 : i32
    return %c0_i32, %arg0 : i32, i32
  }
  func.func @transform_2(%arg0: i32) -> (i32, i32) {
    %c0_i32 = arith.constant 0 : i32
    %c0_i32_0 = arith.constant 0 : i32
    %c0_i32_1 = arith.constant 0 : i32
    return %c0_i32, %c0_i32_0 : i32, i32
  }
  func.func @transform_3(%arg0: i32) -> (i32, i32) {
    %c0_i32 = arith.constant 0 : i32
    %c0_i32_0 = arith.constant 0 : i32
    %c0_i32_1 = arith.constant 0 : i32
    return %c0_i32, %c0_i32_0 : i32, i32
  }
  func.func @transform_4(%arg0: i32) -> (i32, i32) {
    %c0_i32 = arith.constant 0 : i32
    %c0_i32_0 = arith.constant 0 : i32
    %c0_i32_1 = arith.constant 0 : i32
    return %c0_i32, %c0_i32_0 : i32, i32
  }
  func.func @transform_5(%arg0: i32) -> (i32, i32) {
    %c0_i32 = arith.constant 0 : i32
    %c0_i32_0 = arith.constant 0 : i32
    %c0_i32_1 = arith.constant 0 : i32
    return %c0_i32, %c0_i32_0 : i32, i32
  }
}

</mosaic_0001>

<llo_original>
// kernel: domain_classifier_forward.1
$region0: #{domain_classifier_forward.1}
  #allocation0 [shape = 'u32[]', space=smem, size = 0x4, offset = 0x4, fixed_abs, tag = 'smem constant byte address 0x4 - core index']
  #allocation1 [shape = 'u32[144,128]{1,0:T(1,128)}', space=vmem, size = 0x12000, scoped, tag = 'internal scratch']
  #allocation2 [shape = 'f32[2,100]{1,0:T(2,128)}', space=vmem, size = 0x400, scoped, tag = 'scratch operand']
  %s0 = inlined_call_operand.hbm [shape: f32[2,1024], index: 0, kind: input, shape index: {}]
  %s1 = inlined_call_operand.hbm [shape: f32[100,1024], index: 1, kind: input, shape index: {}]
  %s2 = inlined_call_operand.vmem [shape: f32[1,100], index: 2, kind: input, shape index: {}]
  %s3 = inlined_call_operand.vmem [shape: f32[4,100], index: 3, kind: input, shape index: {}]
  %s4 = inlined_call_operand.vmem [shape: f32[1,4], index: 4, kind: input, shape index: {}]
  %s5 = inlined_call_operand.hbm [shape: f32[2,4], index: 5, kind: output, shape index: {}]
  %s6 = sld [smem:[#allocation0]]
  $region69: #{domain_classifier_forward.1} parent=0
    _
  %s8 = ssub.s32 1, %s6
  %s9 = scalar_select 0, %s8, %s6
  $region1: #{domain_classifier_forward.1} parent=0
    #allocation3 [shape = 'u8[8192]{0}', space=vmem, size = 0x2000, scoped, tag = 'input window, operand 0']
    #allocation4 [shape = 's32[2]{0}', space=sflag, size = 0x8, scoped, tag = 'scoped memory for domain_classifier_forward.1']
    #allocation5 [shape = 's32[2]{0}', space=sflag, size = 0x8, scoped, tag = 'scoped memory for domain_classifier_forward.1']
    #allocation6 [shape = 'u8[425984]{0}', space=vmem, size = 0x68000, scoped, tag = 'input window, operand 1']
    #allocation7 [shape = 's32[2]{0}', space=sflag, size = 0x8, scoped, tag = 'scoped memory for domain_classifier_forward.1']
    #allocation8 [shape = 'u8[1024]{0}', space=vmem, size = 0x400, scoped, tag = 'output window, operand 0, single buffered']
    %10 = vsyncpa [#allocation4], 0
    %s11 = scalar_lea.sflag [#allocation4], 1
    %12 = vsyncpa %s11, 0
    %13 = vsyncpa [#allocation7], 0
    %s14 = scalar_lea.sflag [#allocation7], 1
    %15 = vsyncpa %s14, 0
    %16 = vsyncpa [#allocation5], 0
    loop: start=0, step=1, limit=4
    $region2: #{domain_classifier_forward.1} parent=1 // loop_pre_header
      _
    $region3: #{domain_classifier_forward.1} parent=1 // loop_header
      %s18 = sphi 0, %s22
      %p19 = scmp.ge.s32.totalorder %s18, 4
      %s28 = sphi 0, %s30
      %s31 = sphi 0, %s28
      %s32 = sphi 0, %s31
      %s48 = sphi 0, %s32
      %s54 = sphi 0, %s56
      %s57 = sphi 0, %s54
      %s58 = sphi 0, %s57
      %s74 = sphi 0, %s58
      %s78 = sphi 0, %s78
      %s80 = sphi 0, %s78
      %s81 = sphi 0, %s80
      %s95 = sphi 0, %s81
      %s99 = sphi 0, %s99
      %s101 = sphi 0, %s99
      %s102 = sphi 0, %s101
      %s116 = sphi 0, %s102
      %s120 = sphi 0, %s120
      %s122 = sphi 0, %s120
      %s123 = sphi 0, %s122
      %s137 = sphi 0, %s123
      %s141 = sphi 0, %s141
      %s143 = sphi 0, %s141
      %s144 = sphi 0, %s143
      %s158 = sphi 0, %s144
    $region4: #{domain_classifier_forward.1} parent=1 // loop_header_branch
      %21 = sbr.rel (%p19) target = $region8
    $region5: #{domain_classifier_forward.1} parent=1 // loop_body
      %s23 = ssub.s32 %s18, 1
      %s24 = ssub.s32 %s18, 2
      %s25 = sadd.s32 %s18, 1
      %s26 = ssub.s32 %s18, %s25
      %p27 = scmp.eq.s32.totalorder %s26, 0
      %s29 = sadd.s32 %s28, 1
      %s30 = scalar_select %p27, %s28, %s29
      %p33 = pneg %p27
      %p34 = scmp.eq.s32.totalorder %s18, 1
      %p35 = por %p33, %p34
      %p36 = scmp.ne.s32.totalorder %s28, %s31
      %p37 = scmp.eq.s32.totalorder %s18, 0
      %p38 = por %p36, %p37
      %p39 = scmp.ne.s32.totalorder %s28, %s31
      %p40 = scmp.eq.s32.totalorder %s23, 1
      %p41 = por %p39, %p40
      %p42 = scmp.ne.s32.totalorder %s31, %s32
      %p43 = scmp.eq.s32.totalorder %s23, 0
      %p44 = por %p42, %p43
      %p45 = scmp.ne.s32.totalorder %s31, %s32
      %p46 = scmp.eq.s32.totalorder %s24, 1
      %p47 = por %p45, %p46
      %p49 = scmp.ne.s32.totalorder %s32, %s48
      %p50 = scmp.eq.s32.totalorder %s24, 0
      %p51 = por %p49, %p50
      %s52 = ssub.s32 %s18, %s25
      %p53 = scmp.eq.s32.totalorder %s52, 0
      %s55 = sadd.s32 %s54, 1
      %s56 = scalar_select %p53, %s54, %s55
      %p59 = pneg %p53
      %p60 = scmp.eq.s32.totalorder %s18, 1
      %p61 = por %p59, %p60
      %p62 = scmp.ne.s32.totalorder %s54, %s57
      %p63 = scmp.eq.s32.totalorder %s18, 0
      %p64 = por %p62, %p63
      %p65 = scmp.ne.s32.totalorder %s54, %s57
      %p66 = scmp.eq.s32.totalorder %s23, 1
      %p67 = por %p65, %p66
      %p68 = scmp.ne.s32.totalorder %s57, %s58
      %p69 = scmp.eq.s32.totalorder %s23, 0
      %p70 = por %p68, %p69
      %p71 = scmp.ne.s32.totalorder %s57, %s58
      %p72 = scmp.eq.s32.totalorder %s24, 1
      %p73 = por %p71, %p72
      %p75 = scmp.ne.s32.totalorder %s58, %s74
      %p76 = scmp.eq.s32.totalorder %s24, 0
      %p77 = por %p75, %p76
      %s79 = sadd.s32 %s78, 1
      %p82 = scmp.eq.s32.totalorder %s18, 1
      %p83 = scmp.ne.s32.totalorder %s78, %s80
      %p84 = scmp.eq.s32.totalorder %s18, 0
      %p85 = por %p83, %p84
      %p86 = scmp.ne.s32.totalorder %s78, %s80
      %p87 = scmp.eq.s32.totalorder %s23, 1
      %p88 = por %p86, %p87
      %p89 = scmp.ne.s32.totalorder %s80, %s81
      %p90 = scmp.eq.s32.totalorder %s23, 0
      %p91 = por %p89, %p90
      %p92 = scmp.ne.s32.totalorder %s80, %s81
      %p93 = scmp.eq.s32.totalorder %s24, 1
      %p94 = por %p92, %p93
      %p96 = scmp.ne.s32.totalorder %s81, %s95
      %p97 = scmp.eq.s32.totalorder %s24, 0
      %p98 = por %p96, %p97
      %s100 = sadd.s32 %s99, 1
      %p103 = scmp.eq.s32.totalorder %s18, 1
      %p104 = scmp.ne.s32.totalorder %s99, %s101
      %p105 = scmp.eq.s32.totalorder %s18, 0
      %p106 = por %p104, %p105
      %p107 = scmp.ne.s32.totalorder %s99, %s101
      %p108 = scmp.eq.s32.totalorder %s23, 1
      %p109 = por %p107, %p108
      %p110 = scmp.ne.s32.totalorder %s101, %s102
      %p111 = scmp.eq.s32.totalorder %s23, 0
      %p112 = por %p110, %p111
      %p113 = scmp.ne.s32.totalorder %s101, %s102
      %p114 = scmp.eq.s32.totalorder %s24, 1
      %p115 = por %p113, %p114
      %p117 = scmp.ne.s32.totalorder %s102, %s116
      %p118 = scmp.eq.s32.totalorder %s24, 0
      %p119 = por %p117, %p118
      %s121 = sadd.s32 %s120, 1
      %p124 = scmp.eq.s32.totalorder %s18, 1
      %p125 = scmp.ne.s32.totalorder %s120, %s122
      %p126 = scmp.eq.s32.totalorder %s18, 0
      %p127 = por %p125, %p126
      %p128 = scmp.ne.s32.totalorder %s120, %s122
      %p129 = scmp.eq.s32.totalorder %s23, 1
      %p130 = por %p128, %p129
      %p131 = scmp.ne.s32.totalorder %s122, %s123
      %p132 = scmp.eq.s32.totalorder %s23, 0
      %p133 = por %p131, %p132
      %p134 = scmp.ne.s32.totalorder %s122, %s123
      %p135 = scmp.eq.s32.totalorder %s24, 1
      %p136 = por %p134, %p135
      %p138 = scmp.ne.s32.totalorder %s123, %s137
      %p139 = scmp.eq.s32.totalorder %s24, 0
      %p140 = por %p138, %p139
      %s142 = sadd.s32 %s141, 1
      %p145 = scmp.eq.s32.totalorder %s18, 1
      %p146 = scmp.ne.s32.totalorder %s141, %s143
      %p147 = scmp.eq.s32.totalorder %s18, 0
      %p148 = por %p146, %p147
      %p149 = scmp.ne.s32.totalorder %s141, %s143
      %p150 = scmp.eq.s32.totalorder %s23, 1
      %p151 = por %p149, %p150
      %p152 = scmp.ne.s32.totalorder %s143, %s144
      %p153 = scmp.eq.s32.totalorder %s23, 0
      %p154 = por %p152, %p153
      %p155 = scmp.ne.s32.totalorder %s143, %s144
      %p156 = scmp.eq.s32.totalorder %s24, 1
      %p157 = por %p155, %p156
      %p159 = scmp.ne.s32.totalorder %s144, %s158
      %p160 = scmp.eq.s32.totalorder %s24, 0
      %p161 = por %p159, %p160
      %p162 = scmp.le.s32.totalorder 1, %s18
      %p163 = scmp.lt.s32.totalorder %s18, 3
      %p164 = pnand %p162, %p163
      %p165 = pneg %p164
      // Predicated region
      $region9: #{domain_classifier_forward.1} parent=5 // pred_check
        _
      $region10: #{domain_classifier_forward.1} parent=5 // pred_check_branch
        %167 = sbr.rel (%p164) target = $region12
      $region11: #{domain_classifier_forward.1} parent=5 // pred_region
        %s168 = ssub.s32 %s18, 1
        // Predicated region
        $region13: #{domain_classifier_forward.1} parent=11 // pred_check
          %p169 = pneg %p91
        $region14: #{domain_classifier_forward.1} parent=11 // pred_check_branch
          %171 = sbr.rel (%p169) target = $region16
        $region15: #{domain_classifier_forward.1} parent=11 // pred_region
          _
        $region16: #{domain_classifier_forward.1} parent=11 // pred_fallthru
          _
        // Predicated region
        $region17: #{domain_classifier_forward.1} parent=11 // pred_check
          %p172 = pneg %p112
        $region18: #{domain_classifier_forward.1} parent=11 // pred_check_branch
          %174 = sbr.rel (%p172) target = $region20
        $region19: #{domain_classifier_forward.1} parent=11 // pred_region
          _
        $region20: #{domain_classifier_forward.1} parent=11 // pred_fallthru
          _
        // Predicated region
        $region21: #{domain_classifier_forward.1} parent=11 // pred_check
          %p175 = pneg %p133
        $region22: #{domain_classifier_forward.1} parent=11 // pred_check_branch
          %177 = sbr.rel (%p175) target = $region24
        $region23: #{domain_classifier_forward.1} parent=11 // pred_region
          _
        $region24: #{domain_classifier_forward.1} parent=11 // pred_fallthru
          _
      $region12: #{domain_classifier_forward.1} parent=5 // pred_fallthru
        _
      %p178 = scmp.lt.s32.totalorder %s18, 2
      // Predicated region
      $region25: #{domain_classifier_forward.1} parent=5 // pred_check
        %p179 = pneg %p178
      $region26: #{domain_classifier_forward.1} parent=5 // pred_check_branch
        %181 = sbr.rel (%p179) target = $region28
      $region27: #{domain_classifier_forward.1} parent=5 // pred_region
        // Predicated region
        $region29: #{domain_classifier_forward.1} parent=27 // pred_check
          %p182 = pneg %p38
        $region30: #{domain_classifier_forward.1} parent=27 // pred_check_branch
          %184 = sbr.rel (%p182) target = $region32
        $region31: #{domain_classifier_forward.1} parent=27 // pred_region
          %s185 = sand.u32 %s28, 1
          %s186 = scalar_lea.sflag [#allocation4], %s185
          %s187 = sand.u32 %s28, 1
          %s188 = smul.addr %s187, 8
          %s189 = scalar_lea.vmem [#allocation3], %s188
          %s190 = smul.u32 4, %s18
          %s192 = ssub.s32 128, 128
          %193 = vsyncadd %s186, %s192
          %s194 = smul.addr %s190, 32
          %s195 = scalar_lea.hbm %s0, %s194
          %s197 = sshll.u32 %s189, 4
          %s198 = int_to_ptr.vmem [resolvable:$true] %s197
          %200 = dma.hbm_to_vmem [thread:$0]  %s195, 128, %s198, %s186
        $region32: #{domain_classifier_forward.1} parent=27 // pred_fallthru
          _
        // Predicated region
        $region33: #{domain_classifier_forward.1} parent=27 // pred_check
          %p201 = pneg %p64
        $region34: #{domain_classifier_forward.1} parent=27 // pred_check_branch
          %203 = sbr.rel (%p201) target = $region36
        $region35: #{domain_classifier_forward.1} parent=27 // pred_region
          %s204 = sand.u32 %s54, 1
          %s205 = scalar_lea.sflag [#allocation7], %s204
          %s206 = sand.u32 %s54, 1
          %s207 = smul.addr %s206, 416
          %s208 = scalar_lea.vmem [#allocation6], %s207
          %s209 = smul.u32 4, %s18
          %s211 = ssub.s32 6656, 6656
          %212 = vsyncadd %s205, %s211
          %s213 = smul.addr %s209, 128
          %s214 = scalar_lea.hbm %s1, %s213
          %s215 = sshll.u32 %s208, 4
          %s216 = int_to_ptr.vmem [resolvable:$true] %s215
          %221 = dma.hbm_to_vmem [thread:$0]  %s214, 6656, %s216, %s205, 1024, 512, 32
        $region36: #{domain_classifier_forward.1} parent=27 // pred_fallthru
          _
      $region28: #{domain_classifier_forward.1} parent=5 // pred_fallthru
        _
      %p222 = scmp.le.s32.totalorder 1, %s18
      %p223 = scmp.lt.s32.totalorder %s18, 3
      %p224 = pnand %p222, %p223
      %p225 = pneg %p224
      // Predicated region
      $region37: #{domain_classifier_forward.1} parent=5 // pred_check
        _
      $region38: #{domain_classifier_forward.1} parent=5 // pred_check_branch
        %227 = sbr.rel (%p224) target = $region40
      $region39: #{domain_classifier_forward.1} parent=5 // pred_region
        %s228 = ssub.s32 %s18, 1
        %s229 = sand.u32 %s31, 1
        %s230 = scalar_lea.sflag [#allocation4], %s229
        %s231 = sand.u32 %s31, 1
        %s232 = smul.addr %s231, 8
        %s233 = scalar_lea.vmem [#allocation3], %s232
        // Predicated region
        $region41: #{domain_classifier_forward.1} parent=39 // pred_check
          %p234 = pneg %p44
        $region42: #{domain_classifier_forward.1} parent=39 // pred_check_branch
          %236 = sbr.rel (%p234) target = $region44
        $region43: #{domain_classifier_forward.1} parent=39 // pred_region
          %237 = dma.done %s230, 128
        $region44: #{domain_classifier_forward.1} parent=39 // pred_fallthru
          _
        %s238 = sand.u32 %s57, 1
        %s239 = scalar_lea.sflag [#allocation7], %s238
        %s240 = sand.u32 %s57, 1
        %s241 = smul.addr %s240, 416
        %s242 = scalar_lea.vmem [#allocation6], %s241
        // Predicated region
        $region45: #{domain_classifier_forward.1} parent=39 // pred_check
          %p243 = pneg %p70
        $region46: #{domain_classifier_forward.1} parent=39 // pred_check_branch
          %245 = sbr.rel (%p243) target = $region48
        $region47: #{domain_classifier_forward.1} parent=39 // pred_region
          %246 = dma.done %s239, 6656
        $region48: #{domain_classifier_forward.1} parent=39 // pred_fallthru
          _
        %s247 = sand.u32 %s31, 1
        %s248 = scalar_lea.sflag [#allocation4], %s247
        %s249 = sand.u32 %s31, 1
        %s250 = smul.addr %s249, 8
        %s251 = scalar_lea.vmem [#allocation3], %s250
        %p252 = pneg %p44
        %p253 = pneg %p41
        %s254 = sand.u32 %s57, 1
        %s255 = scalar_lea.sflag [#allocation7], %s254
        %s256 = sand.u32 %s57, 1
        %s257 = smul.addr %s256, 416
        %s258 = scalar_lea.vmem [#allocation6], %s257
        %p259 = pneg %p70
        %p260 = pneg %p67
        %p261 = pneg %p91
        %p262 = pneg %p88
        %p263 = pneg %p112
        %p264 = pneg %p109
        %p265 = pneg %p133
        %p266 = pneg %p130
        %p267 = pneg %p154
        %p268 = pneg %p151
        %s269 = smul.u32 4, %s23
        %s270 = smul.u32 4, %s23
        %p271 = scmp.eq.s32.totalorder %s23, 0
        // Predicated region
        $region49: #{domain_classifier_forward.1} parent=39 // pred_check
          %p272 = pneg %p271
        $region50: #{domain_classifier_forward.1} parent=39 // pred_check_branch
          %274 = sbr.rel (%p272) target = $region52
        $region51: #{domain_classifier_forward.1} parent=39 // pred_region
          %vm275 = vcmask 812032
          %276 = vst.msk [vmem:[#allocation2] sm:$0x3] %vm275, 0.0
        $region52: #{domain_classifier_forward.1} parent=39 // pred_fallthru
          _
        %v277 = vld [vmem:[#allocation2] sm:$0x3]
        %v278 = vld [vmem:[%s233] sm:$0xff]
        %v279 = vld [vmem:[%s242] sm:$0xff]
        %v280 = vld [vmem:[%s242 + $0x8] sm:$0xff]
        %v281 = vld [vmem:[%s242 + $0x10] sm:$0xff]
        %v282 = vld [vmem:[%s242 + $0x18] sm:$0xff]
        %v283 = vld [vmem:[%s242 + $0x20] sm:$0xff]
        %v284 = vld [vmem:[%s242 + $0x28] sm:$0xff]
        %v285 = vld [vmem:[%s242 + $0x30] sm:$0xff]
        %v286 = vld [vmem:[%s242 + $0x38] sm:$0xff]
        %v287 = vld [vmem:[%s242 + $0x40] sm:$0xff]
        %v288 = vld [vmem:[%s242 + $0x48] sm:$0xff]
        %v289 = vld [vmem:[%s242 + $0x50] sm:$0xff]
        %v290 = vld [vmem:[%s242 + $0x58] sm:$0xff]
        %v291 = vld [vmem:[%s242 + $0x60] sm:$0xff]
        %v292 = vld [vmem:[%s242 + $0x68] sm:$0xff]
        %v293 = vld [vmem:[%s242 + $0x70] sm:$0xff]
        %v294 = vld [vmem:[%s242 + $0x78] sm:$0xff]
        %v295 = vld [vmem:[%s242 + $0x80] sm:$0xff]
        %v296 = vld [vmem:[%s242 + $0x88] sm:$0xff]
        %v297 = vld [vmem:[%s242 + $0x90] sm:$0xff]
        %v298 = vld [vmem:[%s242 + $0x98] sm:$0xff]
        %v299 = vld [vmem:[%s242 + $0xa0] sm:$0xff]
        %v300 = vld [vmem:[%s242 + $0xa8] sm:$0xff]
        %v301 = vld [vmem:[%s242 + $0xb0] sm:$0xff]
        %v302 = vld [vmem:[%s242 + $0xb8] sm:$0xff]
        %v303 = vld [vmem:[%s242 + $0xc0] sm:$0xff]
        %v304 = vld [vmem:[%s242 + $0xc8] sm:$0xff]
        %v305 = vld [vmem:[%s242 + $0xd0] sm:$0xff]
        %v306 = vld [vmem:[%s242 + $0xd8] sm:$0xff]
        %v307 = vld [vmem:[%s242 + $0xe0] sm:$0xff]
        %v308 = vld [vmem:[%s242 + $0xe8] sm:$0xff]
        %v309 = vld [vmem:[%s242 + $0xf0] sm:$0xff]
        %v310 = vld [vmem:[%s242 + $0xf8] sm:$0xff]
        %v311 = vld [vmem:[%s242 + $0x100] sm:$0xff]
        %v312 = vld [vmem:[%s242 + $0x108] sm:$0xff]
        %v313 = vld [vmem:[%s242 + $0x110] sm:$0xff]
        %v314 = vld [vmem:[%s242 + $0x118] sm:$0xff]
        %v315 = vld [vmem:[%s242 + $0x120] sm:$0xff]
        %v316 = vld [vmem:[%s242 + $0x128] sm:$0xff]
        %v317 = vld [vmem:[%s242 + $0x130] sm:$0xff]
        %v318 = vld [vmem:[%s242 + $0x138] sm:$0xff]
        %v319 = vld [vmem:[%s242 + $0x140] sm:$0xff]
        %v320 = vld [vmem:[%s242 + $0x148] sm:$0xff]
        %v321 = vld [vmem:[%s242 + $0x150] sm:$0xff]
        %v322 = vld [vmem:[%s242 + $0x158] sm:$0xff]
        %v323 = vld [vmem:[%s242 + $0x160] sm:$0xff]
        %v324 = vld [vmem:[%s242 + $0x168] sm:$0xff]
        %v325 = vld [vmem:[%s242 + $0x170] sm:$0xff]
        %v326 = vld [vmem:[%s242 + $0x178] sm:$0xff]
        %v327 = vld [vmem:[%s242 + $0x180] sm:$0xf]
        %v328 = vld [vmem:[%s242 + $0x188] sm:$0xf]
        %v329 = vld [vmem:[%s242 + $0x190] sm:$0xf]
        %v330 = vld [vmem:[%s242 + $0x198] sm:$0xf]
        %v332 = vcombine.high %v278, %v278
        %v334 = vunpack.c.l.s4 1983009808
        %v335 = vunpack.c.0.s8 %v334
        %v336 = vlaneseq
        %v337 = vshrl.u32 %v336, 7
        %v338 = vsub.s32 %v335, %v337
        %v339 = vrot.slane %v278, %v338
        %v341 = vunpack.c.l.s4 1983009808
        %v342 = vunpack.c.0.s8 %v341
        %v343 = vlaneseq
        %v344 = vshrl.u32 %v343, 7
        %v345 = vsub.s32 %v342, %v344
        %v346 = vrot.slane %v332, %v345
        %v347 = vcombine.high %v339, %v339
        %v348 = vcombine.high %v346, %v346
        %353 = vmatprep.subr.mxu0 %v280
        %354 = vmatpush1.xpose.msra.mxu0 %v279
        %355 = vmatprep.subr.mxu0 %v284
        %356 = vmatpush1.xpose.msra.mxu0 %v283
        %357 = vmatprep.subr.mxu0 %v288
        %358 = vmatpush1.xpose.msra.mxu0 %v287
        %359 = vmatprep.subr.mxu0 %v292
        %360 = vmatpush1.xpose.msra.mxu0 %v291
        %361 = vmatprep.subr.mxu0 %v296
        %362 = vmatpush1.xpose.msra.mxu0 %v295
        %363 = vmatprep.subr.mxu0 %v300
        %364 = vmatpush1.xpose.msra.mxu0 %v299
        %365 = vmatprep.subr.mxu0 %v304
        %366 = vmatpush1.xpose.msra.mxu0 %v303
        %367 = vmatprep.subr.mxu0 %v308
        %368 = vmatpush1.xpose.msra.mxu0 %v307
        %369 = vmatprep.subr.mxu0 %v312
        %370 = vmatpush1.xpose.msra.mxu0 %v311
        %371 = vmatprep.subr.mxu0 %v316
        %372 = vmatpush1.xpose.msra.mxu0 %v315
        %373 = vmatprep.subr.mxu0 %v320
        %374 = vmatpush1.xpose.msra.mxu0 %v319
        %375 = vmatprep.subr.mxu0 %v324
        %376 = vmatpush1.xpose.msra.mxu0 %v323
        %377 = vmatprep.subr.mxu0 %v328
        %378 = vmatpush1.xpose.msra.mxu0 %v327
        %379 = vmatprep.subr.mxu0 0.0
        %380 = vmatpush1.xpose.msra.mxu0 0.0
        %381 = vmatprep.subr.mxu0 0.0
        %382 = vmatpush1.xpose.msra.mxu0 0.0
        %383 = vmatprep.subr.mxu0 0.0
        %384 = vmatpush1.xpose.msra.mxu0 0.0
        %385 = vmatprep.subr.mxu0 0.0
        %386 = vmatpush1.xpose.msra.mxu0 0.0
        %387 = vmatprep.subr.mxu0 0.0
        %388 = vmatpush1.xpose.msra.mxu0 0.0
        %389 = vmatprep.subr.mxu0 0.0
        %390 = vmatpush1.xpose.msra.mxu0 0.0
        %391 = vmatprep.subr.mxu0 0.0
        %392 = vmatpush1.xpose.msra.mxu0 0.0
        %393 = vmatprep.subr.mxu0 0.0
        %394 = vmatpush1.xpose.msra.mxu0 0.0
        %395 = vmatprep.subr.mxu0 0.0
        %396 = vmatpush1.xpose.msra.mxu0 0.0
        %397 = vmatprep.subr.mxu0 0.0
        %398 = vmatpush1.xpose.msra.mxu0 0.0
        %399 = vmatprep.subr.mxu0 0.0
        %400 = vmatpush1.xpose.msra.mxu0 0.0
        %401 = vmatprep.subr.mxu0 0.0
        %402 = vmatpush1.xpose.msra.mxu0 0.0
        %403 = vmatprep.subr.mxu0 0.0
        %404 = vmatpush1.xpose.msra.mxu0 0.0
        %405 = vmatprep.subr.mxu0 0.0
        %406 = vmatpush1.xpose.msra.mxu0 0.0
        %407 = vmatprep.subr.mxu0 0.0
        %408 = vmatpush1.xpose.msra.mxu0 0.0
        %409 = vmatprep.subr.mxu0 0.0
        %410 = vmatpush1.xpose.msra.mxu0 0.0
        %411 = vmatprep.subr.mxu0 0.0
        %412 = vmatpush1.xpose.msra.mxu0 0.0
        %413 = vmatprep.subr.mxu0 0.0
        %414 = vmatpush1.xpose.msra.mxu0 0.0
        %415 = vmatprep.subr.mxu0 0.0
        %416 = vmatpush1.xpose.msra.mxu0 0.0
        %417 = vmatprep.mubr.f32.mxu0 %v347
        %418 = vmatmul.mubr.f32.gmra.mrb[0].mxu0 %v339
        %v419 = vpop.f32.mrb[0].mxu0
        %v420 = vadd.f32 0.0, %v419
        %v421 = vpop.f32.mrb[0].mxu0
        %422 = vdwg.mxu0
        %423 = vmatprep.subr.mxu0 %v282
        %424 = vmatpush1.xpose.msra.mxu0 %v281
        %425 = vmatprep.subr.mxu0 %v286
        %426 = vmatpush1.xpose.msra.mxu0 %v285
        %427 = vmatprep.subr.mxu0 %v290
        %428 = vmatpush1.xpose.msra.mxu0 %v289
        %429 = vmatprep.subr.mxu0 %v294
        %430 = vmatpush1.xpose.msra.mxu0 %v293
        %431 = vmatprep.subr.mxu0 %v298
        %432 = vmatpush1.xpose.msra.mxu0 %v297
        %433 = vmatprep.subr.mxu0 %v302
        %434 = vmatpush1.xpose.msra.mxu0 %v301
        %435 = vmatprep.subr.mxu0 %v306
        %436 = vmatpush1.xpose.msra.mxu0 %v305
        %437 = vmatprep.subr.mxu0 %v310
        %438 = vmatpush1.xpose.msra.mxu0 %v309
        %439 = vmatprep.subr.mxu0 %v314
        %440 = vmatpush1.xpose.msra.mxu0 %v313
        %441 = vmatprep.subr.mxu0 %v318
        %442 = vmatpush1.xpose.msra.mxu0 %v317
        %443 = vmatprep.subr.mxu0 %v322
        %444 = vmatpush1.xpose.msra.mxu0 %v321
        %445 = vmatprep.subr.mxu0 %v326
        %446 = vmatpush1.xpose.msra.mxu0 %v325
        %447 = vmatprep.subr.mxu0 %v330
        %448 = vmatpush1.xpose.msra.mxu0 %v329
        %449 = vmatprep.subr.mxu0 0.0
        %450 = vmatpush1.xpose.msra.mxu0 0.0
        %451 = vmatprep.subr.mxu0 0.0
        %452 = vmatpush1.xpose.msra.mxu0 0.0
        %453 = vmatprep.subr.mxu0 0.0
        %454 = vmatpush1.xpose.msra.mxu0 0.0
        %455 = vmatprep.subr.mxu0 0.0
        %456 = vmatpush1.xpose.msra.mxu0 0.0
        %457 = vmatprep.subr.mxu0 0.0
        %458 = vmatpush1.xpose.msra.mxu0 0.0
        %459 = vmatprep.subr.mxu0 0.0
        %460 = vmatpush1.xpose.msra.mxu0 0.0
        %461 = vmatprep.subr.mxu0 0.0
        %462 = vmatpush1.xpose.msra.mxu0 0.0
        %463 = vmatprep.subr.mxu0 0.0
        %464 = vmatpush1.xpose.msra.mxu0 0.0
        %465 = vmatprep.subr.mxu0 0.0
        %466 = vmatpush1.xpose.msra.mxu0 0.0
        %467 = vmatprep.subr.mxu0 0.0
        %468 = vmatpush1.xpose.msra.mxu0 0.0
        %469 = vmatprep.subr.mxu0 0.0
        %470 = vmatpush1.xpose.msra.mxu0 0.0
        %471 = vmatprep.subr.mxu0 0.0
        %472 = vmatpush1.xpose.msra.mxu0 0.0
        %473 = vmatprep.subr.mxu0 0.0
        %474 = vmatpush1.xpose.msra.mxu0 0.0
        %475 = vmatprep.subr.mxu0 0.0
        %476 = vmatpush1.xpose.msra.mxu0 0.0
        %477 = vmatprep.subr.mxu0 0.0
        %478 = vmatpush1.xpose.msra.mxu0 0.0
        %479 = vmatprep.subr.mxu0 0.0
        %480 = vmatpush1.xpose.msra.mxu0 0.0
        %481 = vmatprep.subr.mxu0 0.0
        %482 = vmatpush1.xpose.msra.mxu0 0.0
        %483 = vmatprep.subr.mxu0 0.0
        %484 = vmatpush1.xpose.msra.mxu0 0.0
        %485 = vmatprep.subr.mxu0 0.0
        %486 = vmatpush1.xpose.msra.mxu0 0.0
        %487 = vmatprep.mubr.f32.mxu0 %v348
        %488 = vmatmul.mubr.f32.gmra.mrb[0].mxu0 %v346
        %v489 = vpop.f32.mrb[0].mxu0
        %v490 = vadd.f32 %v420, %v489
        %v491 = vpop.f32.mrb[0].mxu0
        %492 = vdwg.mxu0
        %v493 = vadd.f32 %v277, %v490
        %vm494 = vcmask 812032
        %495 = vst.msk [vmem:[#allocation2] sm:$0x3] %vm494, %v493
        %p496 = scmp.eq.s32.totalorder %s23, 1
        // Predicated region
        $region53: #{domain_classifier_forward.1} parent=39 // pred_check
          %p497 = pneg %p496
        $region54: #{domain_classifier_forward.1} parent=39 // pred_check_branch
          %499 = sbr.rel (%p497) target = $region56
        $region55: #{domain_classifier_forward.1} parent=39 // pred_region
          %v500 = vld [vmem:[#allocation2] sm:$0x3]
          %v501 = vld [vmem:[%s2] sm:$0x1]
          %v503 = vlaneseq
          %v504 = vshrl.u32 %v503, 7
          %v505 = vsub.s32 0, %v504
          %v506 = vrot.slane %v501, %v505
          %v508 = vadd.f32 %v500, %v506
          %v509 = vmax.f32 %v508, 0.0
          %v510 = vld [vmem:[%s3] sm:$0xf]
          %v511 = vld [vmem:[%s4] sm:$0x1]
          %v513 = vlaneseq
          %v514 = vshrl.u32 %v513, 7
          %v515 = vsub.s32 0, %v514
          %v516 = vrot.slane %v511, %v515
          %vm518 = vcmask 818176
          %v520 = vsel %vm518, %v509, 0
          %v523 = vsel %vm518, %v510, 0
          %525 = vmatprep.subr.mxu0 0.0
          %526 = vmatpush1.xpose.msra.mxu0 %v523
          %527 = vmatprep.subr.mxu0 0.0
          %528 = vmatpush1.xpose.msra.mxu0 0.0
          %529 = vmatprep.subr.mxu0 0.0
          %530 = vmatpush1.xpose.msra.mxu0 0.0
          %531 = vmatprep.subr.mxu0 0.0
          %532 = vmatpush1.xpose.msra.mxu0 0.0
          %533 = vmatprep.subr.mxu0 0.0
          %534 = vmatpush1.xpose.msra.mxu0 0.0
          %535 = vmatprep.subr.mxu0 0.0
          %536 = vmatpush1.xpose.msra.mxu0 0.0
          %537 = vmatprep.subr.mxu0 0.0
          %538 = vmatpush1.xpose.msra.mxu0 0.0
          %539 = vmatprep.subr.mxu0 0.0
          %540 = vmatpush1.xpose.msra.mxu0 0.0
          %541 = vmatprep.subr.mxu0 0.0
          %542 = vmatpush1.xpose.msra.mxu0 0.0
          %543 = vmatprep.subr.mxu0 0.0
          %544 = vmatpush1.xpose.msra.mxu0 0.0
          %545 = vmatprep.subr.mxu0 0.0
          %546 = vmatpush1.xpose.msra.mxu0 0.0
          %547 = vmatprep.subr.mxu0 0.0
          %548 = vmatpush1.xpose.msra.mxu0 0.0
          %549 = vmatprep.subr.mxu0 0.0
          %550 = vmatpush1.xpose.msra.mxu0 0.0
          %551 = vmatprep.subr.mxu0 0.0
          %552 = vmatpush1.xpose.msra.mxu0 0.0
          %553 = vmatprep.subr.mxu0 0.0
          %554 = vmatpush1.xpose.msra.mxu0 0.0
          %555 = vmatprep.subr.mxu0 0.0
          %556 = vmatpush1.xpose.msra.mxu0 0.0
          %557 = vmatprep.subr.mxu0 0.0
          %558 = vmatpush1.xpose.msra.mxu0 0.0
          %559 = vmatprep.subr.mxu0 0.0
          %560 = vmatpush1.xpose.msra.mxu0 0.0
          %561 = vmatprep.subr.mxu0 0.0
          %562 = vmatpush1.xpose.msra.mxu0 0.0
          %563 = vmatprep.subr.mxu0 0.0
          %564 = vmatpush1.xpose.msra.mxu0 0.0
          %565 = vmatprep.subr.mxu0 0.0
          %566 = vmatpush1.xpose.msra.mxu0 0.0
          %567 = vmatprep.subr.mxu0 0.0
          %568 = vmatpush1.xpose.msra.mxu0 0.0
          %569 = vmatprep.subr.mxu0 0.0
          %570 = vmatpush1.xpose.msra.mxu0 0.0
          %571 = vmatprep.subr.mxu0 0.0
          %572 = vmatpush1.xpose.msra.mxu0 0.0
          %573 = vmatprep.subr.mxu0 0.0
          %574 = vmatpush1.xpose.msra.mxu0 0.0
          %575 = vmatprep.subr.mxu0 0.0
          %576 = vmatpush1.xpose.msra.mxu0 0.0
          %577 = vmatprep.subr.mxu0 0.0
          %578 = vmatpush1.xpose.msra.mxu0 0.0
          %579 = vmatprep.subr.mxu0 0.0
          %580 = vmatpush1.xpose.msra.mxu0 0.0
          %581 = vmatprep.subr.mxu0 0.0
          %582 = vmatpush1.xpose.msra.mxu0 0.0
          %583 = vmatprep.subr.mxu0 0.0
          %584 = vmatpush1.xpose.msra.mxu0 0.0
          %585 = vmatprep.subr.mxu0 0.0
          %586 = vmatpush1.xpose.msra.mxu0 0.0
          %587 = vmatprep.subr.mxu0 0.0
          %588 = vmatpush1.xpose.msra.mxu0 0.0
          %589 = vmatprep.mubr.f32.mxu0 0.0
          %590 = vmatmul.mubr.f32.gmra.mrb[0].mxu0 %v520
          %v591 = vpop.f32.mrb[0].mxu0
          %v592 = vadd.f32 %v516, %v591
          %v593 = vpop.f32.mrb[0].mxu0
          %594 = vdwg.mxu0
          %vm595 = vcmask 25600
          %v596 = vsel %vm595, %v592, -inf
          %597 = vmax.xlane.f32.xlu0 %v596
          %v598 = vpop.xlane.xlu0 %597
          %v599 = vsub.f32 %v592, %v598
          %v600 = vmul.f32 %v599, 1.442695
          %v601 = vpow.pop %v600
          %v602 = vsel %vm595, %v601, 0.0
          %603 = vadd.xlane.f32.xlu0 %v602
          %v604 = vpop.xlane.xlu0 %603
          %v605 = vlog2.pop %v604
          %v606 = vmul.f32 %v605, 0.6931472
          %v607 = vsub.f32 %v599, %v606
          %608 = vst.msk [vmem:[#allocation8] sm:$0x3] %vm595, %v607
        $region56: #{domain_classifier_forward.1} parent=39 // pred_fallthru
          _
        // Predicated region
        $region57: #{domain_classifier_forward.1} parent=39 // pred_check
          %p609 = pneg %p151
        $region58: #{domain_classifier_forward.1} parent=39 // pred_check_branch
          %611 = sbr.rel (%p609) target = $region60
        $region59: #{domain_classifier_forward.1} parent=39 // pred_region
          %s613 = ssub.s32 32, 32
          %614 = vsyncadd [#allocation5], %s613
          %s616 = sshll.u32 [#allocation8], 4
          %s617 = int_to_ptr.vmem [resolvable:$true] %s616
          %619 = dma.vmem_to_hbm [thread:$0]  %s617, 32, %s5, [#allocation5]
        $region60: #{domain_classifier_forward.1} parent=39 // pred_fallthru
          _
        // Predicated region
        $region61: #{domain_classifier_forward.1} parent=39 // pred_check
          %p620 = pneg %p151
        $region62: #{domain_classifier_forward.1} parent=39 // pred_check_branch
          %622 = sbr.rel (%p620) target = $region64
        $region63: #{domain_classifier_forward.1} parent=39 // pred_region
          %623 = dma.done [#allocation5], 32
        $region64: #{domain_classifier_forward.1} parent=39 // pred_fallthru
          _
      $region40: #{domain_classifier_forward.1} parent=5 // pred_fallthru
        _
      %p624 = scmp.le.s32.totalorder 2, %s18
      // Predicated region
      $region65: #{domain_classifier_forward.1} parent=5 // pred_check
        %p625 = pneg %p624
      $region66: #{domain_classifier_forward.1} parent=5 // pred_check_branch
        %627 = sbr.rel (%p625) target = $region68
      $region67: #{domain_classifier_forward.1} parent=5 // pred_region
        %s628 = ssub.s32 %s18, 2
      $region68: #{domain_classifier_forward.1} parent=5 // pred_fallthru
        _
    $region6: #{domain_classifier_forward.1} parent=1 // loop_footer
      %s22 = sadd.s32 1, %s18
    $region7: #{domain_classifier_forward.1} parent=1 // loop_footer_branch
      %17 = sbr.rel target = $region3
    $region8: #{domain_classifier_forward.1} parent=1 // loop_exit
      _
    %629 = vsyncpa [#allocation4], 1
    %s630 = scalar_lea.sflag [#allocation4], 1
    %631 = vsyncpa %s630, 1
    %632 = vsyncpa [#allocation7], 1
    %s633 = scalar_lea.sflag [#allocation7], 1
    %634 = vsyncpa %s633, 1
    %635 = vsyncpa [#allocation5], 1
    %s636 = scalar_lea.sflag [#allocation5], 1
    %637 = vsyncpa %s636, 1

</llo_original>
